<compile_context>
chip_gen: v7x
topology: tpu7x:2x2x1
jax: 0.10.0
libtpu: 0.0.40
codegen_flags: <defaults>
</compile_context>

<pallas_src>
import functools

import jax
import jax.numpy as jnp
from jax import lax
from jax.experimental import pallas as pl
from jax.experimental.pallas import tpu as pltpu


def _round_up(x, m):
    return (x + m - 1) // m * m


def _focal_loss_kernel(logits_ref, target_ref, alphaw_ref, out_ref, *, gamma, inv_n):
    step = pl.program_id(0)

    @pl.when(step == 0)
    def _():
        out_ref[...] = jnp.zeros_like(out_ref)

    x = logits_ref[...].astype(jnp.float32)            # (TN, C)
    t = target_ref[...]                                 # (TN, 1) int32
    aw = alphaw_ref[...]                                 # (TN, 1) f32 (0 on padded rows)

    # Numerically-stable softmax statistics; exp(x - m) is reused for pt.
    m = jnp.max(x, axis=-1, keepdims=True)               # (TN, 1)
    e = jnp.exp(x - m)                                    # (TN, C)  single EUP exp
    s = jnp.sum(e, axis=-1, keepdims=True)                # (TN, 1)

    onehot = lax.broadcasted_iota(jnp.int32, x.shape, 1) == t            # (TN, C)
    x_t = jnp.sum(jnp.where(onehot, x, 0.0), axis=-1, keepdims=True)     # logits[i, t_i]
    e_t = jnp.sum(jnp.where(onehot, e, 0.0), axis=-1, keepdims=True)     # exp(x_t - m)

    ce = jnp.log(s) + m - x_t                             # CrossEntropy (reduction='none')
    pt = e_t / s                                          # == exp(-ce), no second exp

    w = 1.0 - pt
    g = float(gamma)
    if g == int(g) and 0 <= int(g) <= 4:
        p = jnp.ones_like(w)
        for _ in range(int(g)):                           # gamma=2 -> w*w (VPU only)
            p = p * w
        focal = p * ce
    else:
        w = jnp.maximum(w, 0.0)                           # guard pow NaN if pt > 1
        focal = w ** jnp.float32(g) * ce

    # (TN,1) -> (1,1) sublane reduce; padded rows have aw == 0 so they add nothing.
    partial = jnp.sum(focal * aw, axis=0, keepdims=True)
    out_ref[...] = out_ref[...] + partial * jnp.float32(inv_n)


def focal_loss_weight(logits, target, alpha, gamma=2.0, block_rows=512):
    """Pallas TPU implementation of FocalLoss_Weight(alpha, gamma, reduction='mean')."""
    n, c = logits.shape

    # Batch tile: large enough to amortize the ~0.35us/grid-step overhead, small enough
    # that a double-buffered logits tile stays comfortably inside v7x's 64 MiB VMEM.
    itemsize = jnp.dtype(logits.dtype).itemsize
    max_rows_for_vmem = max(8, ((4 * 1024 * 1024) // (c * itemsize)) // 8 * 8)
    tn_cap = max(8, min(int(block_rows), max_rows_for_vmem))

    # Load-balance tiles so padding waste is at most ~one sublane group per tile.
    n8 = _round_up(n, 8)
    num_blocks = pl.cdiv(n8, tn_cap)
    tn = _round_up(pl.cdiv(n8, num_blocks), 8)
    n_pad = tn * num_blocks

    target = target.astype(jnp.int32)
    alpha_w = alpha.astype(jnp.float32)[target]           # tiny (N,) gather in XLA

    if n_pad != n:
        pad = n_pad - n
        logits = jnp.pad(logits, ((0, pad), (0, 0)))
        target = jnp.pad(target, (0, pad))
        alpha_w = jnp.pad(alpha_w, (0, pad))               # zero weight => no contribution

    target2d = target.reshape(n_pad, 1)
    alphaw2d = alpha_w.reshape(n_pad, 1)

    kernel = functools.partial(_focal_loss_kernel, gamma=float(gamma), inv_n=1.0 / n)

    out = pl.pallas_call(
        kernel,
        out_shape=jax.ShapeDtypeStruct((1, 1), jnp.float32),
        grid=(num_blocks,),
        in_specs=[
            pl.BlockSpec((tn, c), lambda i: (i, 0)),       # logits tile (orig dtype)
            pl.BlockSpec((tn, 1), lambda i: (i, 0)),       # target tile
            pl.BlockSpec((tn, 1), lambda i: (i, 0)),       # alpha[target] tile
        ],
        out_specs=pl.BlockSpec((1, 1), lambda i: (0, 0)),  # resident scalar accumulator
        compiler_params=pltpu.CompilerParams(
            dimension_semantics=("arbitrary",)),            # serial accumulation axis
    )(logits, target2d, alphaw2d)
    return out[0, 0]


def _reference(logits, target, alpha, gamma=2.0):
    """Pure-JAX reference mirroring the PyTorch module."""
    x = logits.astype(jnp.float32)
    lse = jax.nn.logsumexp(x, axis=-1)
    x_t = jnp.take_along_axis(x, target[:, None], axis=-1)[:, 0]
    ce = lse - x_t
    pt = jnp.exp(-ce)
    focal = (1.0 - pt) ** gamma * ce
    focal = focal * alpha[target]
    return jnp.mean(focal)


if __name__ == "__main__":
    key = jax.random.PRNGKey(0)
    k_logits, k_target, k_logits2, k_target2 = jax.random.split(key, 4)

    # Small shapes consistent with the module: batch=8, num_classes=32.
    N, C = 8, 32
    logits = jax.random.normal(k_logits, (N, C), dtype=jnp.float32)
    target = jax.random.randint(k_target, (N,), 0, C, dtype=jnp.int32)
    alpha = jnp.linspace(0.25, 1.0, C, dtype=jnp.float32)  # deterministic class weights

    loss = jax.block_until_ready(focal_loss_weight(logits, target, alpha, gamma=2.0))
    ref = _reference(logits, target, alpha, gamma=2.0)
    assert jnp.allclose(loss, ref, rtol=1e-5, atol=1e-6), (loss, ref)

    # Exercise the multi-tile (grid > 1) + batch-padding path with a small tile.
    N2 = 40
    logits2 = jax.random.normal(k_logits2, (N2, C), dtype=jnp.float32)
    target2 = jax.random.randint(k_target2, (N2,), 0, C, dtype=jnp.int32)
    loss2 = jax.block_until_ready(
        focal_loss_weight(logits2, target2, alpha, gamma=2.0, block_rows=16))
    ref2 = _reference(logits2, target2, alpha, gamma=2.0)
    assert jnp.allclose(loss2, ref2, rtol=1e-5, atol=1e-6), (loss2, ref2)

    print("KERNEL_OK")
</pallas_src>

<mosaic_0001>
module attributes {stable_mosaic.version = 11 : i64} {
  func.func @_focal_loss_kernel(%arg0: i32, %arg1: memref<8x32xf32, #tpu.memory_space<vmem>>, %arg2: memref<8x1xi32, #tpu.memory_space<vmem>>, %arg3: memref<8x1xf32, #tpu.memory_space<vmem>>, %arg4: memref<1x1xf32, #tpu.memory_space<vmem>>) attributes {dimension_semantics = [#tpu.dimension_semantics<arbitrary>], iteration_bounds = array<i64: 1>, scalar_prefetch = 0 : i64, scratch_operands = 0 : i64, tpu.core_type = #tpu.core_type<tc>, window_params = [{transform_indices = @transform_0, window_bounds = array<i64: 8, 32>}, {transform_indices = @transform_1, window_bounds = array<i64: 8, 1>}, {transform_indices = @transform_2, window_bounds = array<i64: 8, 1>}, {pipeline_mode = #tpu.pipeline_mode<synchronous>, transform_indices = @transform_3, window_bounds = array<i64: 1, 1>}]} {
    %c0_i32 = arith.constant 0 : i32
    %0 = arith.cmpi eq, %arg0, %c0_i32 : i32
    %1 = arith.extui %0 : i1 to i32
    %c0_i32_0 = arith.constant 0 : i32
    %2 = arith.cmpi ne, %1, %c0_i32_0 : i32
    scf.if %2 {
      %cst_19 = arith.constant 0.000000e+00 : f32
      %42 = vector.broadcast %cst_19 : f32 to vector<1x1xf32>
      %c0_20 = arith.constant 0 : index
      %c0_21 = arith.constant 0 : index
      %43 = vector.load %arg4[%c0_20, %c0_21] : memref<1x1xf32, #tpu.memory_space<vmem>>, vector<1x1xf32>
      tpu.vector_store %arg4[%c0_20, %c0_21], %42 {strides = array<i32>} : memref<1x1xf32, #tpu.memory_space<vmem>>, vector<1x1xf32>,
    } else {
    }
    %c0 = arith.constant 0 : index
    %c0_1 = arith.constant 0 : index
    %3 = vector.load %arg1[%c0, %c0_1] : memref<8x32xf32, #tpu.memory_space<vmem>>, vector<8x32xf32>
    %c0_2 = arith.constant 0 : index
    %c0_3 = arith.constant 0 : index
    %4 = vector.load %arg2[%c0_2, %c0_3] : memref<8x1xi32, #tpu.memory_space<vmem>>, vector<8x1xi32>
    %c0_4 = arith.constant 0 : index
    %c0_5 = arith.constant 0 : index
    %5 = vector.load %arg3[%c0_4, %c0_5] : memref<8x1xf32, #tpu.memory_space<vmem>>, vector<8x1xf32>
    %cst = arith.constant dense<0xFF800000> : vector<8xf32>
    %6 = vector.multi_reduction <maximumf>, %3, %cst [1] : vector<8x32xf32> to vector<8xf32>
    %7 = vector.shape_cast %6 : vector<8xf32> to vector<8x1xf32>
    %8 = vector.broadcast %7 : vector<8x1xf32> to vector<8x32xf32>
    %9 = arith.subf %3, %8 : vector<8x32xf32>
    %10 = math.exp %9 : vector<8x32xf32>
    %cst_6 = arith.constant dense<0.000000e+00> : vector<8xf32>
    %11 = vector.multi_reduction <add>, %10, %cst_6 [1] : vector<8x32xf32> to vector<8xf32>
    %12 = vector.shape_cast %11 : vector<8xf32> to vector<8x1xf32>
    %13 = tpu.iota {dimensions = array<i32: 1>} : vector<8x32xi32>
    %14 = vector.broadcast %4 : vector<8x1xi32> to vector<8x32xi32>
    %15 = arith.cmpi eq, %13, %14 : vector<8x32xi32>
    %cst_7 = arith.constant 0.000000e+00 : f32
    %16 = vector.broadcast %cst_7 : f32 to vector<8x32xf32>
    %17 = arith.select %15, %3, %16 : vector<8x32xi1>, vector<8x32xf32>
    %cst_8 = arith.constant dense<0.000000e+00> : vector<8xf32>
    %18 = vector.multi_reduction <add>, %17, %cst_8 [1] : vector<8x32xf32> to vector<8xf32>
    %19 = vector.shape_cast %18 : vector<8xf32> to vector<8x1xf32>
    %cst_9 = arith.constant 0.000000e+00 : f32
    %20 = vector.broadcast %cst_9 : f32 to vector<8x32xf32>
    %21 = arith.select %15, %10, %20 : vector<8x32xi1>, vector<8x32xf32>
    %cst_10 = arith.constant dense<0.000000e+00> : vector<8xf32>
    %22 = vector.multi_reduction <add>, %21, %cst_10 [1] : vector<8x32xf32> to vector<8xf32>
    %23 = vector.shape_cast %22 : vector<8xf32> to vector<8x1xf32>
    %24 = math.log %12 : vector<8x1xf32>
    %25 = arith.addf %24, %7 : vector<8x1xf32>
    %26 = arith.subf %25, %19 : vector<8x1xf32>
    %27 = arith.divf %23, %12 : vector<8x1xf32>
    %cst_11 = arith.constant 1.000000e+00 : f32
    %28 = vector.broadcast %cst_11 : f32 to vector<8x1xf32>
    %29 = arith.subf %28, %27 : vector<8x1xf32>
    %cst_12 = arith.constant 1.000000e+00 : f32
    %30 = vector.broadcast %cst_12 : f32 to vector<8x1xf32>
    %31 = arith.mulf %30, %29 : vector<8x1xf32>
    %32 = arith.mulf %31, %29 : vector<8x1xf32>
    %33 = arith.mulf %32, %26 : vector<8x1xf32>
    %34 = arith.mulf %33, %5 : vector<8x1xf32>
    %cst_13 = arith.constant dense<0.000000e+00> : vector<1xf32>
    %35 = vector.multi_reduction <add>, %34, %cst_13 [0] : vector<8x1xf32> to vector<1xf32>
    %36 = vector.shape_cast %35 : vector<1xf32> to vector<1x1xf32>
    %c0_14 = arith.constant 0 : index
    %c0_15 = arith.constant 0 : index
    %37 = vector.load %arg4[%c0_14, %c0_15] : memref<1x1xf32, #tpu.memory_space<vmem>>, vector<1x1xf32>
    %cst_16 = arith.constant 1.250000e-01 : f32
    %38 = vector.broadcast %cst_16 : f32 to vector<1x1xf32>
    %39 = arith.mulf %36, %38 : vector<1x1xf32>
    %40 = arith.addf %37, %39 : vector<1x1xf32>
    %c0_17 = arith.constant 0 : index
    %c0_18 = arith.constant 0 : index
    %41 = vector.load %arg4[%c0_17, %c0_18] : memref<1x1xf32, #tpu.memory_space<vmem>>, vector<1x1xf32>
    tpu.vector_store %arg4[%c0_17, %c0_18], %40 {strides = array<i32>} : memref<1x1xf32, #tpu.memory_space<vmem>>, vector<1x1xf32>,
    return
  }
  func.func @transform_0(%arg0: i32) -> (i32, i32) {
    %c0_i32 = arith.constant 0 : i32
    %c0_i32_0 = arith.constant 0 : i32
    return %arg0, %c0_i32 : i32, i32
  }
  func.func @transform_1(%arg0: i32) -> (i32, i32) {
    %c0_i32 = arith.constant 0 : i32
    %c0_i32_0 = arith.constant 0 : i32
    return %arg0, %c0_i32 : i32, i32
  }
  func.func @transform_2(%arg0: i32) -> (i32, i32) {
    %c0_i32 = arith.constant 0 : i32
    %c0_i32_0 = arith.constant 0 : i32
    return %arg0, %c0_i32 : i32, i32
  }
  func.func @transform_3(%arg0: i32) -> (i32, i32) {
    %c0_i32 = arith.constant 0 : i32
    %c0_i32_0 = arith.constant 0 : i32
    %c0_i32_1 = arith.constant 0 : i32
    return %c0_i32, %c0_i32_0 : i32, i32
  }
}

</mosaic_0001>

<llo_original>
// kernel: tpu_custom_call.1
$region0: #{tpu_custom_call.1}
  #allocation0 [shape = 'u32[]', space=smem, size = 0x4, offset = 0x4, fixed_abs, tag = 'smem constant byte address 0x4 - core index']
  #allocation1 [shape = 'u32[144,128]{1,0:T(1,128)}', space=vmem, size = 0x12000, scoped, tag = 'internal scratch']
  %s0 = inlined_call_operand.vmem [shape: f32[8,32], index: 0, kind: input, shape index: {}]
  %s1 = inlined_call_operand.vmem [shape: s32[8,1], index: 1, kind: input, shape index: {}]
  %s2 = inlined_call_operand.vmem [shape: f32[8,1], index: 2, kind: input, shape index: {}]
  %s3 = inlined_call_operand.hbm [shape: f32[1,1], index: 3, kind: output, shape index: {}]
  %s4 = sld [smem:[#allocation0]]
  $region26: #{tpu_custom_call.1} parent=0
    _
  %s6 = ssub.s32 1, %s4
  %s7 = scalar_select 0, %s6, %s4
  $region1: #{tpu_custom_call.1} parent=0
    #allocation2 [shape = 'u8[512]{0}', space=vmem, size = 0x400, scoped, tag = 'output window, operand 0, single buffered']
    #allocation3 [shape = 's32[1]{0}', space=sflag, size = 0x4, scoped, tag = 'scoped memory for tpu_custom_call.1']
    %8 = vsyncpa [#allocation3], 0
    // Predicated region
    $region2: #{tpu_custom_call.1} parent=1 // pred_check
      _
    $region3: #{tpu_custom_call.1} parent=1 // pred_check_branch
      %10 = sbr.rel (0) target = $region5
    $region4: #{tpu_custom_call.1} parent=1 // pred_region
      _
    $region5: #{tpu_custom_call.1} parent=1 // pred_fallthru
      _
    // Predicated region
    $region6: #{tpu_custom_call.1} parent=1 // pred_check
      _
    $region7: #{tpu_custom_call.1} parent=1 // pred_check_branch
      %12 = sbr.rel (0) target = $region9
    $region8: #{tpu_custom_call.1} parent=1 // pred_region
      _
    $region9: #{tpu_custom_call.1} parent=1 // pred_fallthru
      _
    // Predicated region
    $region10: #{tpu_custom_call.1} parent=1 // pred_check
      _
    $region11: #{tpu_custom_call.1} parent=1 // pred_check_branch
      %14 = sbr.rel (0) target = $region13
    $region12: #{tpu_custom_call.1} parent=1 // pred_region
      _
    $region13: #{tpu_custom_call.1} parent=1 // pred_fallthru
      _
    %p15 = scmp.eq.s32.totalorder 0, 0
    // Predicated region
    $region14: #{tpu_custom_call.1} parent=1 // pred_check
      %p16 = pneg %p15
    $region15: #{tpu_custom_call.1} parent=1 // pred_check_branch
      %18 = sbr.rel (%p16) target = $region17
    $region16: #{tpu_custom_call.1} parent=1 // pred_region
      %vm19 = vcmask 0
      %20 = vst.msk [vmem:[#allocation2] sm:$0x1] %vm19, 0.0
    $region17: #{tpu_custom_call.1} parent=1 // pred_fallthru
      _
    %v21 = vld [vmem:[%s0] sm:$0xff]
    %v22 = vld [vmem:[%s1] sm:$0xff]
    %v23 = vld [vmem:[%s2] sm:$0xff]
    %vm24 = vcmask 261120
    %v25 = vsel %vm24, %v21, -inf
    %26 = vmax.xlane.f32.xlu0 %v25
    %v27 = vpop.xlane.xlu0 %26
    %v28 = vsub.f32 %v21, %v27
    %v29 = vmul.f32 %v28, 1.442695
    %v30 = vpow.pop %v29
    %v31 = vsel %vm24, %v30, 0.0
    %32 = vadd.xlane.f32.xlu0 %v31
    %v33 = vpop.xlane.xlu0 %32
    %v34 = vlaneseq
    %v35 = vand.u32 %v34, 127
    %36 = vset.pattern.permute.xlu0 0
    %37 = vperm.xlu0 %36, %v22
    %v38 = vpop.permute.xlu0 %37
    %vm39 = vcmp.eq.s32.totalorder %v35, %v38
    %v40 = vsel %vm39, %v21, 0.0
    %v41 = vsel %vm24, %v40, 0.0
    %42 = vadd.xlane.f32.xlu0 %v41
    %v43 = vpop.xlane.xlu0 %42
    %v44 = vsel %vm39, %v30, 0.0
    %v45 = vsel %vm24, %v44, 0.0
    %46 = vadd.xlane.f32.xlu0 %v45
    %v47 = vpop.xlane.xlu0 %46
    %v48 = vlog2.pop %v33
    %v49 = vmul.f32 %v48, 0.6931472
    %v50 = vadd.f32 %v49, %v27
    %v51 = vsub.f32 %v50, %v43
    %v52 = vrcp.pop %v33
    %v53 = vmul.f32 %v47, %v52
    %v54 = vsub.f32 1.0, %v53
    %v55 = vmul.f32 %v54, %v54
    %v56 = vmul.f32 %v55, %v51
    %v57 = vmul.f32 %v56, %v23
    %vm58 = vcmask 7168
    %v59 = vsel %vm58, %v57, 0.0
    %v60 = vrot.slane %v59, 4
    %v61 = vadd.f32 %v59, %v60
    %v62 = vrot.slane %v61, 2
    %v63 = vadd.f32 %v61, %v62
    %v64 = vrot.slane %v63, 1
    %v65 = vadd.f32 %v63, %v64
    %v66 = vld [vmem:[#allocation2] sm:$0x1]
    %v67 = vmul.f32 %v65, 0.125
    %v68 = vadd.f32 %v66, %v67
    %vm69 = vcmask 0
    %70 = vst.msk [vmem:[#allocation2] sm:$0x1] %vm69, %v68
    // Predicated region
    $region18: #{tpu_custom_call.1} parent=1 // pred_check
      _
    $region19: #{tpu_custom_call.1} parent=1 // pred_check_branch
      %72 = sbr.rel (0) target = $region21
    $region20: #{tpu_custom_call.1} parent=1 // pred_region
      %s74 = ssub.s32 16, 16
      %75 = vsyncadd [#allocation3], %s74
      %s77 = sshll.u32 [#allocation2], 4
      %s78 = int_to_ptr.vmem [resolvable:$true] %s77
      %80 = dma.vmem_to_hbm [thread:$0]  %s78, 16, %s3, [#allocation3]
    $region21: #{tpu_custom_call.1} parent=1 // pred_fallthru
      _
    // Predicated region
    $region22: #{tpu_custom_call.1} parent=1 // pred_check
      _
    $region23: #{tpu_custom_call.1} parent=1 // pred_check_branch
      %82 = sbr.rel (0) target = $region25
    $region24: #{tpu_custom_call.1} parent=1 // pred_region
      %83 = dma.done [#allocation3], 16
    $region25: #{tpu_custom_call.1} parent=1 // pred_fallthru
      _
    %84 = vsyncpa [#allocation3], 1

</llo_original>
